<compile_context>
chip_gen: v7x
topology: tpu7x:2x2x1
jax: 0.10.0
libtpu: 0.0.40
codegen_flags: <defaults>
</compile_context>

<pallas_src>
import jax
import jax.numpy as jnp
from jax.experimental import pallas as pl
from jax.experimental.pallas import tpu as pltpu

N_STATES = 4
N_ACTIONS = 4
H1 = 400
H2 = 300

# Lane-aligned (padded) sizes used inside the kernel.
H1P = 512    # 400 -> 512
H2P = 384    # 300 -> 384
OUTP = 128   # 4   -> 128 (lane-dense output store)

# Per-step batch tile. 512 keeps per-step VMEM (~2.5 MiB incl. double-buffered
# x/out tiles + ~0.5 MiB resident weights) far under the 16/32 MiB default
# scoped limits on v5e/v6e/v7x.
MAX_TILE_B = 512


def _round_up(x, m):
    return ((x + m - 1) // m) * m


def _mlp_kernel(x_ref, w1_ref, b1_ref, w2_ref, b2_ref, w3_ref, b3_ref, o_ref):
    x = x_ref[...]                        # (TB, 4) f32
    w1 = w1_ref[...]                      # (4, H1P) f32

    # fc1: contraction depth is only 4 -> do it on the VPU as broadcast-FMAs,
    # freeing the MXU slot for the fc2/fc3 matmuls.
    h1 = x[:, 0:1] * w1[0:1, :]
    for k in range(1, N_STATES):
        h1 = h1 + x[:, k:k + 1] * w1[k:k + 1, :]
    h1 = jnp.maximum(h1 + b1_ref[...], 0.0)                       # (TB, H1P) f32

    # fc2: bf16 MXU matmul, f32 accumulation, f32 elementwise.
    h2 = jnp.dot(h1.astype(jnp.bfloat16), w2_ref[...],
                 preferred_element_type=jnp.float32)
    h2 = jnp.maximum(h2 + b2_ref[...], 0.0)                       # (TB, H2P) f32

    # fc3: bf16 MXU matmul into a lane-dense (TB, 128) output block.
    out = jnp.dot(h2.astype(jnp.bfloat16), w3_ref[...],
                  preferred_element_type=jnp.float32)
    o_ref[...] = out + b3_ref[...]


def init_params(key):
    """nn.Linear-style init: U(-1/sqrt(fan_in), 1/sqrt(fan_in)); weights (in, out)."""
    ks = jax.random.split(key, 6)

    def lin(kw, kb, fan_in, fan_out):
        bound = 1.0 / jnp.sqrt(jnp.float32(fan_in))
        w = jax.random.uniform(kw, (fan_in, fan_out), jnp.float32, -bound, bound)
        b = jax.random.uniform(kb, (1, fan_out), jnp.float32, -bound, bound)
        return w, b

    w1, b1 = lin(ks[0], ks[1], N_STATES, H1)
    w2, b2 = lin(ks[2], ks[3], H1, H2)
    w3, b3 = lin(ks[4], ks[5], H2, N_ACTIONS)
    return (w1, b1, w2, b2, w3, b3)


def prepare_params(params):
    """One-time weight prep: zero-pad to lane multiples, cast big weights to bf16."""
    w1, b1, w2, b2, w3, b3 = params
    w1p = jnp.zeros((N_STATES, H1P), jnp.float32).at[:, :H1].set(w1)
    b1p = jnp.zeros((1, H1P), jnp.float32).at[:, :H1].set(b1)
    w2p = jnp.zeros((H1P, H2P), jnp.float32).at[:H1, :H2].set(w2).astype(jnp.bfloat16)
    b2p = jnp.zeros((1, H2P), jnp.float32).at[:, :H2].set(b2)
    w3p = jnp.zeros((H2P, OUTP), jnp.float32).at[:H2, :N_ACTIONS].set(w3).astype(jnp.bfloat16)
    b3p = jnp.zeros((1, OUTP), jnp.float32).at[:, :N_ACTIONS].set(b3)
    return (w1p, b1p, w2p, b2p, w3p, b3p)


@jax.jit
def net_forward(x, prepped):
    """Pallas forward for a (B, N_STATES) batch, using prepared (padded) params."""
    w1, b1, w2, b2, w3, b3 = prepped
    B = x.shape[0]
    tile_b = min(MAX_TILE_B, _round_up(max(B, 1), 8))
    b_pad = _round_up(B, tile_b)
    if b_pad != B:
        x = jnp.pad(x, ((0, b_pad - B), (0, 0)))
    grid = (b_pad // tile_b,)

    # Weights/biases: full-array blocks with a constant index_map -> DMA'd once,
    # resident in VMEM across all grid steps.
    def full(arr):
        return pl.BlockSpec(arr.shape, lambda i: (0, 0))

    flops = 2 * b_pad * (N_STATES * H1P + H1P * H2P + H2P * OUTP)
    bytes_accessed = (x.size * 4 + b_pad * OUTP * 4
                      + w1.size * 4 + b1.size * 4
                      + w2.size * 2 + b2.size * 4
                      + w3.size * 2 + b3.size * 4)

    out = pl.pallas_call(
        _mlp_kernel,
        out_shape=jax.ShapeDtypeStruct((b_pad, OUTP), jnp.float32),
        grid=grid,
        in_specs=[
            pl.BlockSpec((tile_b, N_STATES), lambda i: (i, 0)),
            full(w1), full(b1), full(w2), full(b2), full(w3), full(b3),
        ],
        out_specs=pl.BlockSpec((tile_b, OUTP), lambda i: (i, 0)),
        compiler_params=pltpu.CompilerParams(
            dimension_semantics=("parallel",)),
        cost_estimate=pl.CostEstimate(
            flops=flops, transcendentals=0, bytes_accessed=bytes_accessed),
    )(x, w1, b1, w2, b2, w3, b3)

    return out[:B, :N_ACTIONS]


def net_forward_ref(x, params):
    """Pure-JAX f32 reference matching PyTorch Net.forward semantics."""
    w1, b1, w2, b2, w3, b3 = params
    h1 = jnp.maximum(x @ w1 + b1, 0.0)
    h2 = jnp.maximum(h1 @ w2 + b2, 0.0)
    return h2 @ w3 + b3


if __name__ == "__main__":
    key = jax.random.PRNGKey(0)
    k_param, k_x = jax.random.split(key)
    raw_params = init_params(k_param)
    prepped = prepare_params(raw_params)

    B = 2
    x = jax.random.normal(k_x, (B, N_STATES), jnp.float32)

    out = net_forward(x, prepped)
    out = jax.block_until_ready(out)

    ref = net_forward_ref(x, raw_params)
    assert out.shape == (B, N_ACTIONS)
    # Tolerance accounts for bf16 weights / bf16 matmul inputs (f32 accumulation).
    assert jnp.allclose(out, ref, atol=3e-2, rtol=3e-2), (out, ref)

    print("KERNEL_OK")
</pallas_src>

<mosaic_0001>
module attributes {stable_mosaic.version = 11 : i64} {
  func.func @_mlp_kernel(%arg0: i32, %arg1: memref<8x4xf32, #tpu.memory_space<vmem>>, %arg2: memref<4x512xf32, #tpu.memory_space<vmem>>, %arg3: memref<1x512xf32, #tpu.memory_space<vmem>>, %arg4: memref<512x384xbf16, #tpu.memory_space<vmem>>, %arg5: memref<1x384xf32, #tpu.memory_space<vmem>>, %arg6: memref<384x128xbf16, #tpu.memory_space<vmem>>, %arg7: memref<1x128xf32, #tpu.memory_space<vmem>>, %arg8: memref<8x128xf32, #tpu.memory_space<vmem>>) attributes {dimension_semantics = [#tpu.dimension_semantics<parallel>], iteration_bounds = array<i64: 1>, scalar_prefetch = 0 : i64, scratch_operands = 0 : i64, tpu.core_type = #tpu.core_type<tc>, window_params = [{transform_indices = @transform_0, window_bounds = array<i64: 8, 4>}, {pipeline_mode = #tpu.pipeline_mode<synchronous>, transform_indices = @transform_1, window_bounds = array<i64: 4, 512>}, {pipeline_mode = #tpu.pipeline_mode<synchronous>, transform_indices = @transform_2, window_bounds = array<i64: 1, 512>}, {pipeline_mode = #tpu.pipeline_mode<synchronous>, transform_indices = @transform_3, window_bounds = array<i64: 512, 384>}, {pipeline_mode = #tpu.pipeline_mode<synchronous>, transform_indices = @transform_4, window_bounds = array<i64: 1, 384>}, {pipeline_mode = #tpu.pipeline_mode<synchronous>, transform_indices = @transform_5, window_bounds = array<i64: 384, 128>}, {pipeline_mode = #tpu.pipeline_mode<synchronous>, transform_indices = @transform_6, window_bounds = array<i64: 1, 128>}, {transform_indices = @transform_7, window_bounds = array<i64: 8, 128>}]} {
    %c0 = arith.constant 0 : index
    %c0_0 = arith.constant 0 : index
    %0 = vector.load %arg1[%c0, %c0_0] : memref<8x4xf32, #tpu.memory_space<vmem>>, vector<8x4xf32>
    %c0_1 = arith.constant 0 : index
    %c0_2 = arith.constant 0 : index
    %1 = vector.load %arg2[%c0_1, %c0_2] : memref<4x512xf32, #tpu.memory_space<vmem>>, vector<4x512xf32>
    %2 = vector.extract_strided_slice %0 {offsets = [0, 0], sizes = [8, 1], strides = [1, 1]} : vector<8x4xf32> to vector<8x1xf32>
    %3 = vector.extract_strided_slice %1 {offsets = [0, 0], sizes = [1, 512], strides = [1, 1]} : vector<4x512xf32> to vector<1x512xf32>
    %4 = vector.broadcast %2 : vector<8x1xf32> to vector<8x512xf32>
    %5 = vector.broadcast %3 : vector<1x512xf32> to vector<8x512xf32>
    %6 = arith.mulf %4, %5 : vector<8x512xf32>
    %7 = vector.extract_strided_slice %0 {offsets = [0, 1], sizes = [8, 1], strides = [1, 1]} : vector<8x4xf32> to vector<8x1xf32>
    %8 = vector.extract_strided_slice %1 {offsets = [1, 0], sizes = [1, 512], strides = [1, 1]} : vector<4x512xf32> to vector<1x512xf32>
    %9 = vector.broadcast %7 : vector<8x1xf32> to vector<8x512xf32>
    %10 = vector.broadcast %8 : vector<1x512xf32> to vector<8x512xf32>
    %11 = arith.mulf %9, %10 : vector<8x512xf32>
    %12 = arith.addf %6, %11 : vector<8x512xf32>
    %13 = vector.extract_strided_slice %0 {offsets = [0, 2], sizes = [8, 1], strides = [1, 1]} : vector<8x4xf32> to vector<8x1xf32>
    %14 = vector.extract_strided_slice %1 {offsets = [2, 0], sizes = [1, 512], strides = [1, 1]} : vector<4x512xf32> to vector<1x512xf32>
    %15 = vector.broadcast %13 : vector<8x1xf32> to vector<8x512xf32>
    %16 = vector.broadcast %14 : vector<1x512xf32> to vector<8x512xf32>
    %17 = arith.mulf %15, %16 : vector<8x512xf32>
    %18 = arith.addf %12, %17 : vector<8x512xf32>
    %19 = vector.extract_strided_slice %0 {offsets = [0, 3], sizes = [8, 1], strides = [1, 1]} : vector<8x4xf32> to vector<8x1xf32>
    %20 = vector.extract_strided_slice %1 {offsets = [3, 0], sizes = [1, 512], strides = [1, 1]} : vector<4x512xf32> to vector<1x512xf32>
    %21 = vector.broadcast %19 : vector<8x1xf32> to vector<8x512xf32>
    %22 = vector.broadcast %20 : vector<1x512xf32> to vector<8x512xf32>
    %23 = arith.mulf %21, %22 : vector<8x512xf32>
    %24 = arith.addf %18, %23 : vector<8x512xf32>
    %c0_3 = arith.constant 0 : index
    %c0_4 = arith.constant 0 : index
    %25 = vector.load %arg3[%c0_3, %c0_4] : memref<1x512xf32, #tpu.memory_space<vmem>>, vector<1x512xf32>
    %26 = vector.broadcast %25 : vector<1x512xf32> to vector<8x512xf32>
    %27 = arith.addf %24, %26 : vector<8x512xf32>
    %cst = arith.constant 0.000000e+00 : f32
    %28 = vector.broadcast %cst : f32 to vector<8x512xf32>
    %29 = arith.maximumf %27, %28 : vector<8x512xf32>
    %30 = arith.truncf %29 : vector<8x512xf32> to vector<8x512xbf16>
    %c0_5 = arith.constant 0 : index
    %c0_6 = arith.constant 0 : index
    %31 = vector.load %arg4[%c0_5, %c0_6] : memref<512x384xbf16, #tpu.memory_space<vmem>>, vector<512x384xbf16>
    %cst_7 = arith.constant dense<0.000000e+00> : vector<8x384xf32>
    %32 = tpu.matmul %30, %31, %cst_7 {dimension_numbers = #tpu.dot_dimension_numbers<[1], [0], [0], [1], [0, 0, 1, 1], [], []>} : vector<8x512xbf16>, vector<512x384xbf16>, vector<8x384xf32> -> vector<8x384xf32>
    %c0_8 = arith.constant 0 : index
    %c0_9 = arith.constant 0 : index
    %33 = vector.load %arg5[%c0_8, %c0_9] : memref<1x384xf32, #tpu.memory_space<vmem>>, vector<1x384xf32>
    %34 = vector.broadcast %33 : vector<1x384xf32> to vector<8x384xf32>
    %35 = arith.addf %32, %34 : vector<8x384xf32>
    %cst_10 = arith.constant 0.000000e+00 : f32
    %36 = vector.broadcast %cst_10 : f32 to vector<8x384xf32>
    %37 = arith.maximumf %35, %36 : vector<8x384xf32>
    %38 = arith.truncf %37 : vector<8x384xf32> to vector<8x384xbf16>
    %c0_11 = arith.constant 0 : index
    %c0_12 = arith.constant 0 : index
    %39 = vector.load %arg6[%c0_11, %c0_12] : memref<384x128xbf16, #tpu.memory_space<vmem>>, vector<384x128xbf16>
    %cst_13 = arith.constant dense<0.000000e+00> : vector<8x128xf32>
    %40 = tpu.matmul %38, %39, %cst_13 {dimension_numbers = #tpu.dot_dimension_numbers<[1], [0], [0], [1], [0, 0, 1, 1], [], []>} : vector<8x384xbf16>, vector<384x128xbf16>, vector<8x128xf32> -> vector<8x128xf32>
    %c0_14 = arith.constant 0 : index
    %c0_15 = arith.constant 0 : index
    %41 = vector.load %arg7[%c0_14, %c0_15] : memref<1x128xf32, #tpu.memory_space<vmem>>, vector<1x128xf32>
    %42 = vector.broadcast %41 : vector<1x128xf32> to vector<8x128xf32>
    %43 = arith.addf %40, %42 : vector<8x128xf32>
    %c0_16 = arith.constant 0 : index
    %c0_17 = arith.constant 0 : index
    %44 = vector.load %arg8[%c0_16, %c0_17] : memref<8x128xf32, #tpu.memory_space<vmem>>, vector<8x128xf32>
    tpu.vector_store %arg8[%c0_16, %c0_17], %43 {strides = array<i32>} : memref<8x128xf32, #tpu.memory_space<vmem>>, vector<8x128xf32>,
    return
  }
  func.func @transform_0(%arg0: i32) -> (i32, i32) {
    %c0_i32 = arith.constant 0 : i32
    %c0_i32_0 = arith.constant 0 : i32
    return %arg0, %c0_i32 : i32, i32
  }
  func.func @transform_1(%arg0: i32) -> (i32, i32) {
    %c0_i32 = arith.constant 0 : i32
    %c0_i32_0 = arith.constant 0 : i32
    %c0_i32_1 = arith.constant 0 : i32
    return %c0_i32, %c0_i32_0 : i32, i32
  }
  func.func @transform_2(%arg0: i32) -> (i32, i32) {
    %c0_i32 = arith.constant 0 : i32
    %c0_i32_0 = arith.constant 0 : i32
    %c0_i32_1 = arith.constant 0 : i32
    return %c0_i32, %c0_i32_0 : i32, i32
  }
  func.func @transform_3(%arg0: i32) -> (i32, i32) {
    %c0_i32 = arith.constant 0 : i32
    %c0_i32_0 = arith.constant 0 : i32
    %c0_i32_1 = arith.constant 0 : i32
    return %c0_i32, %c0_i32_0 : i32, i32
  }
  func.func @transform_4(%arg0: i32) -> (i32, i32) {
    %c0_i32 = arith.constant 0 : i32
    %c0_i32_0 = arith.constant 0 : i32
    %c0_i32_1 = arith.constant 0 : i32
    return %c0_i32, %c0_i32_0 : i32, i32
  }
  func.func @transform_5(%arg0: i32) -> (i32, i32) {
    %c0_i32 = arith.constant 0 : i32
    %c0_i32_0 = arith.constant 0 : i32
    %c0_i32_1 = arith.constant 0 : i32
    return %c0_i32, %c0_i32_0 : i32, i32
  }
  func.func @transform_6(%arg0: i32) -> (i32, i32) {
    %c0_i32 = arith.constant 0 : i32
    %c0_i32_0 = arith.constant 0 : i32
    %c0_i32_1 = arith.constant 0 : i32
    return %c0_i32, %c0_i32_0 : i32, i32
  }
  func.func @transform_7(%arg0: i32) -> (i32, i32) {
    %c0_i32 = arith.constant 0 : i32
    %c0_i32_0 = arith.constant 0 : i32
    return %arg0, %c0_i32 : i32, i32
  }
}

</mosaic_0001>

<llo_original>
// kernel: net_forward.1
$region0: #{net_forward.1}
  #allocation0 [shape = 'u32[]', space=smem, size = 0x4, offset = 0x4, fixed_abs, tag = 'smem constant byte address 0x4 - core index']
  #allocation1 [shape = 'u32[144,128]{1,0:T(1,128)}', space=vmem, size = 0x12000, scoped, tag = 'internal scratch']
  %s0 = inlined_call_operand.vmem [shape: f32[8,4], index: 0, kind: input, shape index: {}]
  %s1 = inlined_call_operand.hbm [shape: f32[4,512], index: 1, kind: input, shape index: {}]
  %s2 = inlined_call_operand.vmem [shape: f32[1,512], index: 2, kind: input, shape index: {}]
  %s3 = inlined_call_operand.hbm [shape: bf16[512,384], index: 3, kind: input, shape index: {}]
  %s4 = inlined_call_operand.vmem [shape: f32[1,384], index: 4, kind: input, shape index: {}]
  %s5 = inlined_call_operand.hbm [shape: bf16[384,128], index: 5, kind: input, shape index: {}]
  %s6 = inlined_call_operand.vmem [shape: f32[1,128], index: 6, kind: input, shape index: {}]
  %s7 = inlined_call_operand.vmem [shape: f32[8,128], index: 7, kind: output, shape index: {}]
  %s8 = sld [smem:[#allocation0]]
  $region50: #{net_forward.1} parent=0
    _
  %s10 = ssub.s32 1, %s8
  %s11 = scalar_select 0, %s10, %s8
  $region1: #{net_forward.1} parent=0
    #allocation2 [shape = 'u8[8192]{0}', space=vmem, size = 0x2000, scoped, tag = 'input window, operand 1, single buffered']
    #allocation3 [shape = 's32[1]{0}', space=sflag, size = 0x4, scoped, tag = 'scoped memory for net_forward.1']
    #allocation4 [shape = 'u8[393216]{0}', space=vmem, size = 0x60000, scoped, tag = 'input window, operand 3, single buffered']
    #allocation5 [shape = 's32[1]{0}', space=sflag, size = 0x4, scoped, tag = 'scoped memory for net_forward.1']
    #allocation6 [shape = 'u8[98304]{0}', space=vmem, size = 0x18000, scoped, tag = 'input window, operand 5, single buffered']
    %12 = vsyncpa [#allocation3], 0
    %13 = vsyncpa [#allocation5], 0
    // Predicated region
    $region2: #{net_forward.1} parent=1 // pred_check
      _
    $region3: #{net_forward.1} parent=1 // pred_check_branch
      %15 = sbr.rel (0) target = $region5
    $region4: #{net_forward.1} parent=1 // pred_region
      _
    $region5: #{net_forward.1} parent=1 // pred_fallthru
      _
    // Predicated region
    $region6: #{net_forward.1} parent=1 // pred_check
      _
    $region7: #{net_forward.1} parent=1 // pred_check_branch
      %17 = sbr.rel (0) target = $region9
    $region8: #{net_forward.1} parent=1 // pred_region
      %s19 = ssub.s32 256, 256
      %20 = vsyncadd [#allocation3], %s19
      %s22 = sshll.u32 [#allocation2], 4
      %s23 = int_to_ptr.vmem [resolvable:$true] %s22
      %25 = dma.hbm_to_vmem [thread:$0]  %s1, 256, %s23, [#allocation3]
    $region9: #{net_forward.1} parent=1 // pred_fallthru
      _
    // Predicated region
    $region10: #{net_forward.1} parent=1 // pred_check
      _
    $region11: #{net_forward.1} parent=1 // pred_check_branch
      %27 = sbr.rel (0) target = $region13
    $region12: #{net_forward.1} parent=1 // pred_region
      _
    $region13: #{net_forward.1} parent=1 // pred_fallthru
      _
    // Predicated region
    $region14: #{net_forward.1} parent=1 // pred_check
      _
    $region15: #{net_forward.1} parent=1 // pred_check_branch
      %29 = sbr.rel (0) target = $region17
    $region16: #{net_forward.1} parent=1 // pred_region
      %s31 = ssub.s32 12288, 12288
      %32 = vsyncadd [#allocation5], %s31
      %s33 = sshll.u32 [#allocation4], 4
      %s34 = int_to_ptr.vmem [resolvable:$true] %s33
      %39 = dma.hbm_to_vmem [thread:$0]  %s3, 12288, %s34, [#allocation5], 192, 192, 12
    $region17: #{net_forward.1} parent=1 // pred_fallthru
      _
    // Predicated region
    $region18: #{net_forward.1} parent=1 // pred_check
      _
    $region19: #{net_forward.1} parent=1 // pred_check_branch
      %41 = sbr.rel (0) target = $region21
    $region20: #{net_forward.1} parent=1 // pred_region
      _
    $region21: #{net_forward.1} parent=1 // pred_fallthru
      _
    // Predicated region
    $region22: #{net_forward.1} parent=1 // pred_check
      _
    $region23: #{net_forward.1} parent=1 // pred_check_branch
      %43 = sbr.rel (0) target = $region25
    $region24: #{net_forward.1} parent=1 // pred_region
      %s45 = ssub.s32 3072, 3072
      %46 = vsyncadd [#allocation5], %s45
      %s47 = sshll.u32 [#allocation6], 4
      %s48 = int_to_ptr.vmem [resolvable:$true] %s47
      %53 = dma.hbm_to_vmem [thread:$0]  %s5, 3072, %s48, [#allocation5], 64, 64, 4
    $region25: #{net_forward.1} parent=1 // pred_fallthru
      _
    // Predicated region
    $region26: #{net_forward.1} parent=1 // pred_check
      _
    $region27: #{net_forward.1} parent=1 // pred_check_branch
      %55 = sbr.rel (0) target = $region29
    $region28: #{net_forward.1} parent=1 // pred_region
      _
    $region29: #{net_forward.1} parent=1 // pred_fallthru
      _
    // Predicated region
    $region30: #{net_forward.1} parent=1 // pred_check
      _
    $region31: #{net_forward.1} parent=1 // pred_check_branch
      %57 = sbr.rel (0) target = $region33
    $region32: #{net_forward.1} parent=1 // pred_region
      %58 = dma.done [#allocation3], 256
    $region33: #{net_forward.1} parent=1 // pred_fallthru
      _
    // Predicated region
    $region34: #{net_forward.1} parent=1 // pred_check
      _
    $region35: #{net_forward.1} parent=1 // pred_check_branch
      %60 = sbr.rel (0) target = $region37
    $region36: #{net_forward.1} parent=1 // pred_region
      %61 = dma.done [#allocation5], 12288
    $region37: #{net_forward.1} parent=1 // pred_fallthru
      _
    // Predicated region
    $region38: #{net_forward.1} parent=1 // pred_check
      _
    $region39: #{net_forward.1} parent=1 // pred_check_branch
      %63 = sbr.rel (0) target = $region41
    $region40: #{net_forward.1} parent=1 // pred_region
      %64 = dma.done [#allocation5], 3072
    $region41: #{net_forward.1} parent=1 // pred_fallthru
      _
    %v66 = vld [vmem:[%s0] sm:$0xff]
    %v67 = vld [vmem:[#allocation2] sm:$0xff]
    %v68 = vld [vmem:[#allocation2 + $0x8] sm:$0xff]
    %70 = vset.pattern.permute.xlu0 0
    %71 = vperm.xlu0 %70, %v66
    %v72 = vpop.permute.xlu0 %71
    %v76 = vlaneseq
    %v77 = vshrl.u32 %v76, 7
    %v78 = vsub.s32 0, %v77
    %v79 = vrot.slane %v67, %v78
    %v80 = vlaneseq
    %v81 = vshrl.u32 %v80, 7
    %v82 = vsub.s32 4, %v81
    %v83 = vrot.slane %v67, %v82
    %v84 = vlaneseq
    %v85 = vshrl.u32 %v84, 7
    %v86 = vsub.s32 0, %v85
    %v87 = vrot.slane %v68, %v86
    %v88 = vlaneseq
    %v89 = vshrl.u32 %v88, 7
    %v90 = vsub.s32 4, %v89
    %v91 = vrot.slane %v68, %v90
    %v96 = vlaneseq
    %v97 = vshrl.u32 %v96, 7
    %v98 = vsub.s32 0, %v97
    %v99 = vrot.slane %v79, %v98
    %v100 = vlaneseq
    %v101 = vshrl.u32 %v100, 7
    %v102 = vsub.s32 0, %v101
    %v103 = vrot.slane %v83, %v102
    %v104 = vlaneseq
    %v105 = vshrl.u32 %v104, 7
    %v106 = vsub.s32 0, %v105
    %v107 = vrot.slane %v87, %v106
    %v108 = vlaneseq
    %v109 = vshrl.u32 %v108, 7
    %v110 = vsub.s32 0, %v109
    %v111 = vrot.slane %v91, %v110
    %v112 = vmul.f32 %v72, %v99
    %v113 = vmul.f32 %v72, %v103
    %v114 = vmul.f32 %v72, %v107
    %v115 = vmul.f32 %v72, %v111
    %116 = vset.pattern.permute.xlu0 1
    %117 = vperm.xlu0 %116, %v66
    %v118 = vpop.permute.xlu0 %117
    %v120 = vlaneseq
    %v121 = vshrl.u32 %v120, 7
    %v122 = vsub.s32 1, %v121
    %v123 = vrot.slane %v67, %v122
    %v124 = vlaneseq
    %v125 = vshrl.u32 %v124, 7
    %v126 = vsub.s32 5, %v125
    %v127 = vrot.slane %v67, %v126
    %v128 = vlaneseq
    %v129 = vshrl.u32 %v128, 7
    %v130 = vsub.s32 1, %v129
    %v131 = vrot.slane %v68, %v130
    %v132 = vlaneseq
    %v133 = vshrl.u32 %v132, 7
    %v134 = vsub.s32 5, %v133
    %v135 = vrot.slane %v68, %v134
    %v140 = vlaneseq
    %v141 = vshrl.u32 %v140, 7
    %v142 = vsub.s32 1, %v141
    %v143 = vrot.slane %v123, %v142
    %v144 = vlaneseq
    %v145 = vshrl.u32 %v144, 7
    %v146 = vsub.s32 1, %v145
    %v147 = vrot.slane %v127, %v146
    %v148 = vlaneseq
    %v149 = vshrl.u32 %v148, 7
    %v150 = vsub.s32 1, %v149
    %v151 = vrot.slane %v131, %v150
    %v152 = vlaneseq
    %v153 = vshrl.u32 %v152, 7
    %v154 = vsub.s32 1, %v153
    %v155 = vrot.slane %v135, %v154
    %v156 = vmul.f32 %v118, %v143
    %v157 = vmul.f32 %v118, %v147
    %v158 = vmul.f32 %v118, %v151
    %v159 = vmul.f32 %v118, %v155
    %v160 = vadd.f32 %v112, %v156
    %v161 = vadd.f32 %v113, %v157
    %v162 = vadd.f32 %v114, %v158
    %v163 = vadd.f32 %v115, %v159
    %164 = vset.pattern.permute.xlu0 2
    %165 = vperm.xlu0 %164, %v66
    %v166 = vpop.permute.xlu0 %165
    %v168 = vlaneseq
    %v169 = vshrl.u32 %v168, 7
    %v170 = vsub.s32 2, %v169
    %v171 = vrot.slane %v67, %v170
    %v172 = vlaneseq
    %v173 = vshrl.u32 %v172, 7
    %v174 = vsub.s32 6, %v173
    %v175 = vrot.slane %v67, %v174
    %v176 = vlaneseq
    %v177 = vshrl.u32 %v176, 7
    %v178 = vsub.s32 2, %v177
    %v179 = vrot.slane %v68, %v178
    %v180 = vlaneseq
    %v181 = vshrl.u32 %v180, 7
    %v182 = vsub.s32 6, %v181
    %v183 = vrot.slane %v68, %v182
    %v188 = vlaneseq
    %v189 = vshrl.u32 %v188, 7
    %v190 = vsub.s32 2, %v189
    %v191 = vrot.slane %v171, %v190
    %v192 = vlaneseq
    %v193 = vshrl.u32 %v192, 7
    %v194 = vsub.s32 2, %v193
    %v195 = vrot.slane %v175, %v194
    %v196 = vlaneseq
    %v197 = vshrl.u32 %v196, 7
    %v198 = vsub.s32 2, %v197
    %v199 = vrot.slane %v179, %v198
    %v200 = vlaneseq
    %v201 = vshrl.u32 %v200, 7
    %v202 = vsub.s32 2, %v201
    %v203 = vrot.slane %v183, %v202
    %v204 = vmul.f32 %v166, %v191
    %v205 = vmul.f32 %v166, %v195
    %v206 = vmul.f32 %v166, %v199
    %v207 = vmul.f32 %v166, %v203
    %v208 = vadd.f32 %v160, %v204
    %v209 = vadd.f32 %v161, %v205
    %v210 = vadd.f32 %v162, %v206
    %v211 = vadd.f32 %v163, %v207
    %212 = vset.pattern.permute.xlu0 3
    %213 = vperm.xlu0 %212, %v66
    %v214 = vpop.permute.xlu0 %213
    %v216 = vlaneseq
    %v217 = vshrl.u32 %v216, 7
    %v218 = vsub.s32 3, %v217
    %v219 = vrot.slane %v67, %v218
    %v220 = vlaneseq
    %v221 = vshrl.u32 %v220, 7
    %v222 = vsub.s32 7, %v221
    %v223 = vrot.slane %v67, %v222
    %v224 = vlaneseq
    %v225 = vshrl.u32 %v224, 7
    %v226 = vsub.s32 3, %v225
    %v227 = vrot.slane %v68, %v226
    %v228 = vlaneseq
    %v229 = vshrl.u32 %v228, 7
    %v230 = vsub.s32 7, %v229
    %v231 = vrot.slane %v68, %v230
    %v236 = vlaneseq
    %v237 = vshrl.u32 %v236, 7
    %v238 = vsub.s32 3, %v237
    %v239 = vrot.slane %v219, %v238
    %v240 = vlaneseq
    %v241 = vshrl.u32 %v240, 7
    %v242 = vsub.s32 3, %v241
    %v243 = vrot.slane %v223, %v242
    %v244 = vlaneseq
    %v245 = vshrl.u32 %v244, 7
    %v246 = vsub.s32 3, %v245
    %v247 = vrot.slane %v227, %v246
    %v248 = vlaneseq
    %v249 = vshrl.u32 %v248, 7
    %v250 = vsub.s32 3, %v249
    %v251 = vrot.slane %v231, %v250
    %v252 = vmul.f32 %v214, %v239
    %v253 = vmul.f32 %v214, %v243
    %v254 = vmul.f32 %v214, %v247
    %v255 = vmul.f32 %v214, %v251
    %v256 = vadd.f32 %v208, %v252
    %v257 = vadd.f32 %v209, %v253
    %v258 = vadd.f32 %v210, %v254
    %v259 = vadd.f32 %v211, %v255
    %v260 = vld [vmem:[%s2] sm:$0xf]
    %v262 = vlaneseq
    %v263 = vshrl.u32 %v262, 7
    %v264 = vsub.s32 0, %v263
    %v265 = vrot.slane %v260, %v264
    %v266 = vlaneseq
    %v267 = vshrl.u32 %v266, 7
    %v268 = vsub.s32 1, %v267
    %v269 = vrot.slane %v260, %v268
    %v270 = vlaneseq
    %v271 = vshrl.u32 %v270, 7
    %v272 = vsub.s32 2, %v271
    %v273 = vrot.slane %v260, %v272
    %v274 = vlaneseq
    %v275 = vshrl.u32 %v274, 7
    %v276 = vsub.s32 3, %v275
    %v277 = vrot.slane %v260, %v276
    %v282 = vadd.f32 %v256, %v265
    %v283 = vadd.f32 %v257, %v269
    %v284 = vadd.f32 %v258, %v273
    %v285 = vadd.f32 %v259, %v277
    %v286 = vmax.f32 %v282, 0.0
    %v287 = vmax.f32 %v283, 0.0
    %v288 = vmax.f32 %v284, 0.0
    %v289 = vmax.f32 %v285, 0.0
    %v290 = vpack.c.bf16 %v286, %v286
    %v291 = vpack.c.bf16 %v287, %v287
    %v292 = vpack.c.bf16 %v288, %v288
    %v293 = vpack.c.bf16 %v289, %v289
    %v294 = vld [vmem:[#allocation4] sm:$0xff]
    %v295 = vld [vmem:[#allocation4 + $0x8] sm:$0xf]
    %v296 = vld [vmem:[#allocation4 + $0xc] sm:$0xff]
    %v297 = vld [vmem:[#allocation4 + $0x14] sm:$0xf]
    %v298 = vld [vmem:[#allocation4 + $0x18] sm:$0xff]
    %v299 = vld [vmem:[#allocation4 + $0x20] sm:$0xf]
    %v300 = vld [vmem:[#allocation4 + $0x24] sm:$0xff]
    %v301 = vld [vmem:[#allocation4 + $0x2c] sm:$0xf]
    %v302 = vld [vmem:[#allocation4 + $0x30] sm:$0xff]
    %v303 = vld [vmem:[#allocation4 + $0x38] sm:$0xf]
    %v304 = vld [vmem:[#allocation4 + $0x3c] sm:$0xff]
    %v305 = vld [vmem:[#allocation4 + $0x44] sm:$0xf]
    %v306 = vld [vmem:[#allocation4 + $0x48] sm:$0xff]
    %v307 = vld [vmem:[#allocation4 + $0x50] sm:$0xf]
    %v308 = vld [vmem:[#allocation4 + $0x54] sm:$0xff]
    %v309 = vld [vmem:[#allocation4 + $0x5c] sm:$0xf]
    %v310 = vld [vmem:[#allocation4 + $0x60] sm:$0xff]
    %v311 = vld [vmem:[#allocation4 + $0x68] sm:$0xf]
    %v312 = vld [vmem:[#allocation4 + $0x6c] sm:$0xff]
    %v313 = vld [vmem:[#allocation4 + $0x74] sm:$0xf]
    %v314 = vld [vmem:[#allocation4 + $0x78] sm:$0xff]
    %v315 = vld [vmem:[#allocation4 + $0x80] sm:$0xf]
    %v316 = vld [vmem:[#allocation4 + $0x84] sm:$0xff]
    %v317 = vld [vmem:[#allocation4 + $0x8c] sm:$0xf]
    %v318 = vld [vmem:[#allocation4 + $0x90] sm:$0xff]
    %v319 = vld [vmem:[#allocation4 + $0x98] sm:$0xf]
    %v320 = vld [vmem:[#allocation4 + $0x9c] sm:$0xff]
    %v321 = vld [vmem:[#allocation4 + $0xa4] sm:$0xf]
    %v322 = vld [vmem:[#allocation4 + $0xa8] sm:$0xff]
    %v323 = vld [vmem:[#allocation4 + $0xb0] sm:$0xf]
    %v324 = vld [vmem:[#allocation4 + $0xb4] sm:$0xff]
    %v325 = vld [vmem:[#allocation4 + $0xbc] sm:$0xf]
    %v326 = vld [vmem:[#allocation4 + $0xc0] sm:$0xff]
    %v327 = vld [vmem:[#allocation4 + $0xc8] sm:$0xf]
    %v328 = vld [vmem:[#allocation4 + $0xcc] sm:$0xff]
    %v329 = vld [vmem:[#allocation4 + $0xd4] sm:$0xf]
    %v330 = vld [vmem:[#allocation4 + $0xd8] sm:$0xff]
    %v331 = vld [vmem:[#allocation4 + $0xe0] sm:$0xf]
    %v332 = vld [vmem:[#allocation4 + $0xe4] sm:$0xff]
    %v333 = vld [vmem:[#allocation4 + $0xec] sm:$0xf]
    %v334 = vld [vmem:[#allocation4 + $0xf0] sm:$0xff]
    %v335 = vld [vmem:[#allocation4 + $0xf8] sm:$0xf]
    %v336 = vld [vmem:[#allocation4 + $0xfc] sm:$0xff]
    %v337 = vld [vmem:[#allocation4 + $0x104] sm:$0xf]
    %v338 = vld [vmem:[#allocation4 + $0x108] sm:$0xff]
    %v339 = vld [vmem:[#allocation4 + $0x110] sm:$0xf]
    %v340 = vld [vmem:[#allocation4 + $0x114] sm:$0xff]
    %v341 = vld [vmem:[#allocation4 + $0x11c] sm:$0xf]
    %v342 = vld [vmem:[#allocation4 + $0x120] sm:$0xff]
    %v343 = vld [vmem:[#allocation4 + $0x128] sm:$0xf]
    %v344 = vld [vmem:[#allocation4 + $0x12c] sm:$0xff]
    %v345 = vld [vmem:[#allocation4 + $0x134] sm:$0xf]
    %v346 = vld [vmem:[#allocation4 + $0x138] sm:$0xff]
    %v347 = vld [vmem:[#allocation4 + $0x140] sm:$0xf]
    %v348 = vld [vmem:[#allocation4 + $0x144] sm:$0xff]
    %v349 = vld [vmem:[#allocation4 + $0x14c] sm:$0xf]
    %v350 = vld [vmem:[#allocation4 + $0x150] sm:$0xff]
    %v351 = vld [vmem:[#allocation4 + $0x158] sm:$0xf]
    %v352 = vld [vmem:[#allocation4 + $0x15c] sm:$0xff]
    %v353 = vld [vmem:[#allocation4 + $0x164] sm:$0xf]
    %v354 = vld [vmem:[#allocation4 + $0x168] sm:$0xff]
    %v355 = vld [vmem:[#allocation4 + $0x170] sm:$0xf]
    %v356 = vld [vmem:[#allocation4 + $0x174] sm:$0xff]
    %v357 = vld [vmem:[#allocation4 + $0x17c] sm:$0xf]
    %v358 = vld [vmem:[#allocation4 + $0x180] sm:$0xff]
    %v359 = vld [vmem:[#allocation4 + $0x188] sm:$0xf]
    %v360 = vld [vmem:[#allocation4 + $0x18c] sm:$0xff]
    %v361 = vld [vmem:[#allocation4 + $0x194] sm:$0xf]
    %v362 = vld [vmem:[#allocation4 + $0x198] sm:$0xff]
    %v363 = vld [vmem:[#allocation4 + $0x1a0] sm:$0xf]
    %v364 = vld [vmem:[#allocation4 + $0x1a4] sm:$0xff]
    %v365 = vld [vmem:[#allocation4 + $0x1ac] sm:$0xf]
    %v366 = vld [vmem:[#allocation4 + $0x1b0] sm:$0xff]
    %v367 = vld [vmem:[#allocation4 + $0x1b8] sm:$0xf]
    %v368 = vld [vmem:[#allocation4 + $0x1bc] sm:$0xff]
    %v369 = vld [vmem:[#allocation4 + $0x1c4] sm:$0xf]
    %v370 = vld [vmem:[#allocation4 + $0x1c8] sm:$0xff]
    %v371 = vld [vmem:[#allocation4 + $0x1d0] sm:$0xf]
    %v372 = vld [vmem:[#allocation4 + $0x1d4] sm:$0xff]
    %v373 = vld [vmem:[#allocation4 + $0x1dc] sm:$0xf]
    %v374 = vld [vmem:[#allocation4 + $0x1e0] sm:$0xff]
    %v375 = vld [vmem:[#allocation4 + $0x1e8] sm:$0xf]
    %v376 = vld [vmem:[#allocation4 + $0x1ec] sm:$0xff]
    %v377 = vld [vmem:[#allocation4 + $0x1f4] sm:$0xf]
    %v378 = vld [vmem:[#allocation4 + $0x1f8] sm:$0xff]
    %v379 = vld [vmem:[#allocation4 + $0x200] sm:$0xf]
    %v380 = vld [vmem:[#allocation4 + $0x204] sm:$0xff]
    %v381 = vld [vmem:[#allocation4 + $0x20c] sm:$0xf]
    %v382 = vld [vmem:[#allocation4 + $0x210] sm:$0xff]
    %v383 = vld [vmem:[#allocation4 + $0x218] sm:$0xf]
    %v384 = vld [vmem:[#allocation4 + $0x21c] sm:$0xff]
    %v385 = vld [vmem:[#allocation4 + $0x224] sm:$0xf]
    %v386 = vld [vmem:[#allocation4 + $0x228] sm:$0xff]
    %v387 = vld [vmem:[#allocation4 + $0x230] sm:$0xf]
    %v388 = vld [vmem:[#allocation4 + $0x234] sm:$0xff]
    %v389 = vld [vmem:[#allocation4 + $0x23c] sm:$0xf]
    %v390 = vld [vmem:[#allocation4 + $0x240] sm:$0xff]
    %v391 = vld [vmem:[#allocation4 + $0x248] sm:$0xf]
    %v392 = vld [vmem:[#allocation4 + $0x24c] sm:$0xff]
    %v393 = vld [vmem:[#allocation4 + $0x254] sm:$0xf]
    %v394 = vld [vmem:[#allocation4 + $0x258] sm:$0xff]
    %v395 = vld [vmem:[#allocation4 + $0x260] sm:$0xf]
    %v396 = vld [vmem:[#allocation4 + $0x264] sm:$0xff]
    %v397 = vld [vmem:[#allocation4 + $0x26c] sm:$0xf]
    %v398 = vld [vmem:[#allocation4 + $0x270] sm:$0xff]
    %v399 = vld [vmem:[#allocation4 + $0x278] sm:$0xf]
    %v400 = vld [vmem:[#allocation4 + $0x27c] sm:$0xff]
    %v401 = vld [vmem:[#allocation4 + $0x284] sm:$0xf]
    %v402 = vld [vmem:[#allocation4 + $0x288] sm:$0xff]
    %v403 = vld [vmem:[#allocation4 + $0x290] sm:$0xf]
    %v404 = vld [vmem:[#allocation4 + $0x294] sm:$0xff]
    %v405 = vld [vmem:[#allocation4 + $0x29c] sm:$0xf]
    %v406 = vld [vmem:[#allocation4 + $0x2a0] sm:$0xff]
    %v407 = vld [vmem:[#allocation4 + $0x2a8] sm:$0xf]
    %v408 = vld [vmem:[#allocation4 + $0x2ac] sm:$0xff]
    %v409 = vld [vmem:[#allocation4 + $0x2b4] sm:$0xf]
    %v410 = vld [vmem:[#allocation4 + $0x2b8] sm:$0xff]
    %v411 = vld [vmem:[#allocation4 + $0x2c0] sm:$0xf]
    %v412 = vld [vmem:[#allocation4 + $0x2c4] sm:$0xff]
    %v413 = vld [vmem:[#allocation4 + $0x2cc] sm:$0xf]
    %v414 = vld [vmem:[#allocation4 + $0x2d0] sm:$0xff]
    %v415 = vld [vmem:[#allocation4 + $0x2d8] sm:$0xf]
    %v416 = vld [vmem:[#allocation4 + $0x2dc] sm:$0xff]
    %v417 = vld [vmem:[#allocation4 + $0x2e4] sm:$0xf]
    %v418 = vld [vmem:[#allocation4 + $0x2e8] sm:$0xff]
    %v419 = vld [vmem:[#allocation4 + $0x2f0] sm:$0xf]
    %v420 = vld [vmem:[#allocation4 + $0x2f4] sm:$0xff]
    %v421 = vld [vmem:[#allocation4 + $0x2fc] sm:$0xf]
    %v422 = vld [vmem:[%s4] sm:$0x7]
    %v424 = vlaneseq
    %v425 = vshrl.u32 %v424, 7
    %v426 = vsub.s32 0, %v425
    %v427 = vrot.slane %v422, %v426
    %v428 = vlaneseq
    %v429 = vshrl.u32 %v428, 7
    %v430 = vsub.s32 1, %v429
    %v431 = vrot.slane %v422, %v430
    %v432 = vlaneseq
    %v433 = vshrl.u32 %v432, 7
    %v434 = vsub.s32 2, %v433
    %v435 = vrot.slane %v422, %v434
    %v567 = vunpack.c.l.b16 %v294
    %v568 = vunpack.c.h.b16 %v294
    %v569 = vunpack.c.l.b16 %v295
    %v570 = vunpack.c.l.b16 %v296
    %v571 = vunpack.c.h.b16 %v296
    %v572 = vunpack.c.l.b16 %v297
    %v573 = vunpack.c.l.b16 %v298
    %v574 = vunpack.c.h.b16 %v298
    %v575 = vunpack.c.l.b16 %v299
    %v576 = vunpack.c.l.b16 %v300
    %v577 = vunpack.c.h.b16 %v300
    %v578 = vunpack.c.l.b16 %v301
    %v579 = vunpack.c.l.b16 %v302
    %v580 = vunpack.c.h.b16 %v302
    %v581 = vunpack.c.l.b16 %v303
    %v582 = vunpack.c.l.b16 %v304
    %v583 = vunpack.c.h.b16 %v304
    %v584 = vunpack.c.l.b16 %v305
    %v585 = vunpack.c.l.b16 %v306
    %v586 = vunpack.c.h.b16 %v306
    %v587 = vunpack.c.l.b16 %v307
    %v588 = vunpack.c.l.b16 %v308
    %v589 = vunpack.c.h.b16 %v308
    %v590 = vunpack.c.l.b16 %v309
    %v591 = vunpack.c.l.b16 %v310
    %v592 = vunpack.c.h.b16 %v310
    %v593 = vunpack.c.l.b16 %v311
    %v594 = vunpack.c.l.b16 %v312
    %v595 = vunpack.c.h.b16 %v312
    %v596 = vunpack.c.l.b16 %v313
    %v597 = vunpack.c.l.b16 %v314
    %v598 = vunpack.c.h.b16 %v314
    %v599 = vunpack.c.l.b16 %v315
    %v600 = vunpack.c.l.b16 %v316
    %v601 = vunpack.c.h.b16 %v316
    %v602 = vunpack.c.l.b16 %v317
    %v603 = vunpack.c.l.b16 %v318
    %v604 = vunpack.c.h.b16 %v318
    %v605 = vunpack.c.l.b16 %v319
    %v606 = vunpack.c.l.b16 %v320
    %v607 = vunpack.c.h.b16 %v320
    %v608 = vunpack.c.l.b16 %v321
    %v609 = vunpack.c.l.b16 %v322
    %v610 = vunpack.c.h.b16 %v322
    %v611 = vunpack.c.l.b16 %v323
    %v612 = vunpack.c.l.b16 %v324
    %v613 = vunpack.c.h.b16 %v324
    %v614 = vunpack.c.l.b16 %v325
    %v615 = vunpack.c.l.b16 %v326
    %v616 = vunpack.c.h.b16 %v326
    %v617 = vunpack.c.l.b16 %v327
    %v618 = vunpack.c.l.b16 %v328
    %v619 = vunpack.c.h.b16 %v328
    %v620 = vunpack.c.l.b16 %v329
    %v621 = vunpack.c.l.b16 %v330
    %v622 = vunpack.c.h.b16 %v330
    %v623 = vunpack.c.l.b16 %v331
    %v624 = vunpack.c.l.b16 %v332
    %v625 = vunpack.c.h.b16 %v332
    %v626 = vunpack.c.l.b16 %v333
    %v627 = vunpack.c.l.b16 %v334
    %v628 = vunpack.c.h.b16 %v334
    %v629 = vunpack.c.l.b16 %v335
    %v630 = vunpack.c.l.b16 %v336
    %v631 = vunpack.c.h.b16 %v336
    %v632 = vunpack.c.l.b16 %v337
    %v633 = vunpack.c.l.b16 %v338
    %v634 = vunpack.c.h.b16 %v338
    %v635 = vunpack.c.l.b16 %v339
    %v636 = vunpack.c.l.b16 %v340
    %v637 = vunpack.c.h.b16 %v340
    %v638 = vunpack.c.l.b16 %v341
    %v639 = vunpack.c.l.b16 %v342
    %v640 = vunpack.c.h.b16 %v342
    %v641 = vunpack.c.l.b16 %v343
    %v642 = vunpack.c.l.b16 %v344
    %v643 = vunpack.c.h.b16 %v344
    %v644 = vunpack.c.l.b16 %v345
    %v645 = vunpack.c.l.b16 %v346
    %v646 = vunpack.c.h.b16 %v346
    %v647 = vunpack.c.l.b16 %v347
    %v648 = vunpack.c.l.b16 %v348
    %v649 = vunpack.c.h.b16 %v348
    %v650 = vunpack.c.l.b16 %v349
    %v651 = vunpack.c.l.b16 %v350
    %v652 = vunpack.c.h.b16 %v350
    %v653 = vunpack.c.l.b16 %v351
    %v654 = vunpack.c.l.b16 %v352
    %v655 = vunpack.c.h.b16 %v352
    %v656 = vunpack.c.l.b16 %v353
    %v657 = vunpack.c.l.b16 %v354
    %v658 = vunpack.c.h.b16 %v354
    %v659 = vunpack.c.l.b16 %v355
    %v660 = vunpack.c.l.b16 %v356
    %v661 = vunpack.c.h.b16 %v356
    %v662 = vunpack.c.l.b16 %v357
    %v663 = vunpack.c.l.b16 %v358
    %v664 = vunpack.c.h.b16 %v358
    %v665 = vunpack.c.l.b16 %v359
    %v666 = vunpack.c.l.b16 %v360
    %v667 = vunpack.c.h.b16 %v360
    %v668 = vunpack.c.l.b16 %v361
    %v669 = vunpack.c.l.b16 %v362
    %v670 = vunpack.c.h.b16 %v362
    %v671 = vunpack.c.l.b16 %v363
    %v672 = vunpack.c.l.b16 %v364
    %v673 = vunpack.c.h.b16 %v364
    %v674 = vunpack.c.l.b16 %v365
    %v675 = vunpack.c.l.b16 %v366
    %v676 = vunpack.c.h.b16 %v366
    %v677 = vunpack.c.l.b16 %v367
    %v678 = vunpack.c.l.b16 %v368
    %v679 = vunpack.c.h.b16 %v368
    %v680 = vunpack.c.l.b16 %v369
    %v681 = vunpack.c.l.b16 %v370
    %v682 = vunpack.c.h.b16 %v370
    %v683 = vunpack.c.l.b16 %v371
    %v684 = vunpack.c.l.b16 %v372
    %v685 = vunpack.c.h.b16 %v372
    %v686 = vunpack.c.l.b16 %v373
    %v687 = vunpack.c.l.b16 %v374
    %v688 = vunpack.c.h.b16 %v374
    %v689 = vunpack.c.l.b16 %v375
    %v690 = vunpack.c.l.b16 %v376
    %v691 = vunpack.c.h.b16 %v376
    %v692 = vunpack.c.l.b16 %v377
    %v693 = vunpack.c.l.b16 %v378
    %v694 = vunpack.c.h.b16 %v378
    %v695 = vunpack.c.l.b16 %v379
    %v696 = vunpack.c.l.b16 %v380
    %v697 = vunpack.c.h.b16 %v380
    %v698 = vunpack.c.l.b16 %v381
    %v699 = vunpack.c.l.b16 %v382
    %v700 = vunpack.c.h.b16 %v382
    %v701 = vunpack.c.l.b16 %v383
    %v702 = vunpack.c.l.b16 %v384
    %v703 = vunpack.c.h.b16 %v384
    %v704 = vunpack.c.l.b16 %v385
    %v705 = vunpack.c.l.b16 %v386
    %v706 = vunpack.c.h.b16 %v386
    %v707 = vunpack.c.l.b16 %v387
    %v708 = vunpack.c.l.b16 %v388
    %v709 = vunpack.c.h.b16 %v388
    %v710 = vunpack.c.l.b16 %v389
    %v711 = vunpack.c.l.b16 %v390
    %v712 = vunpack.c.h.b16 %v390
    %v713 = vunpack.c.l.b16 %v391
    %v714 = vunpack.c.l.b16 %v392
    %v715 = vunpack.c.h.b16 %v392
    %v716 = vunpack.c.l.b16 %v393
    %v717 = vunpack.c.l.b16 %v394
    %v718 = vunpack.c.h.b16 %v394
    %v719 = vunpack.c.l.b16 %v395
    %v720 = vunpack.c.l.b16 %v396
    %v721 = vunpack.c.h.b16 %v396
    %v722 = vunpack.c.l.b16 %v397
    %v723 = vunpack.c.l.b16 %v398
    %v724 = vunpack.c.h.b16 %v398
    %v725 = vunpack.c.l.b16 %v399
    %v726 = vunpack.c.l.b16 %v400
    %v727 = vunpack.c.h.b16 %v400
    %v728 = vunpack.c.l.b16 %v401
    %v729 = vunpack.c.l.b16 %v402
    %v730 = vunpack.c.h.b16 %v402
    %v731 = vunpack.c.l.b16 %v403
    %v732 = vunpack.c.l.b16 %v404
    %v733 = vunpack.c.h.b16 %v404
    %v734 = vunpack.c.l.b16 %v405
    %v735 = vunpack.c.l.b16 %v406
    %v736 = vunpack.c.h.b16 %v406
    %v737 = vunpack.c.l.b16 %v407
    %v738 = vunpack.c.l.b16 %v408
    %v739 = vunpack.c.h.b16 %v408
    %v740 = vunpack.c.l.b16 %v409
    %v741 = vunpack.c.l.b16 %v410
    %v742 = vunpack.c.h.b16 %v410
    %v743 = vunpack.c.l.b16 %v411
    %v744 = vunpack.c.l.b16 %v412
    %v745 = vunpack.c.h.b16 %v412
    %v746 = vunpack.c.l.b16 %v413
    %v747 = vunpack.c.l.b16 %v414
    %v748 = vunpack.c.h.b16 %v414
    %v749 = vunpack.c.l.b16 %v415
    %v750 = vunpack.c.l.b16 %v416
    %v751 = vunpack.c.h.b16 %v416
    %v752 = vunpack.c.l.b16 %v417
    %v753 = vunpack.c.l.b16 %v418
    %v754 = vunpack.c.h.b16 %v418
    %v755 = vunpack.c.l.b16 %v419
    %v756 = vunpack.c.l.b16 %v420
    %v757 = vunpack.c.h.b16 %v420
    %v758 = vunpack.c.l.b16 %v421
    %v759 = vpack.c.b16 %v570, %v567
    %v760 = vpack.c.b16 %v571, %v568
    %v761 = vpack.c.b16 %v572, %v569
    %v762 = vpack.c.b16 %v576, %v573
    %v763 = vpack.c.b16 %v577, %v574
    %v764 = vpack.c.b16 %v578, %v575
    %v765 = vpack.c.b16 %v582, %v579
    %v766 = vpack.c.b16 %v583, %v580
    %v767 = vpack.c.b16 %v584, %v581
    %v768 = vpack.c.b16 %v588, %v585
    %v769 = vpack.c.b16 %v589, %v586
    %v770 = vpack.c.b16 %v590, %v587
    %v771 = vpack.c.b16 %v594, %v591
    %v772 = vpack.c.b16 %v595, %v592
    %v773 = vpack.c.b16 %v596, %v593
    %v774 = vpack.c.b16 %v600, %v597
    %v775 = vpack.c.b16 %v601, %v598
    %v776 = vpack.c.b16 %v602, %v599
    %v777 = vpack.c.b16 %v606, %v603
    %v778 = vpack.c.b16 %v607, %v604
    %v779 = vpack.c.b16 %v608, %v605
    %v780 = vpack.c.b16 %v612, %v609
    %v781 = vpack.c.b16 %v613, %v610
    %v782 = vpack.c.b16 %v614, %v611
    %v783 = vpack.c.b16 %v618, %v615
    %v784 = vpack.c.b16 %v619, %v616
    %v785 = vpack.c.b16 %v620, %v617
    %v786 = vpack.c.b16 %v624, %v621
    %v787 = vpack.c.b16 %v625, %v622
    %v788 = vpack.c.b16 %v626, %v623
    %v789 = vpack.c.b16 %v630, %v627
    %v790 = vpack.c.b16 %v631, %v628
    %v791 = vpack.c.b16 %v632, %v629
    %v792 = vpack.c.b16 %v636, %v633
    %v793 = vpack.c.b16 %v637, %v634
    %v794 = vpack.c.b16 %v638, %v635
    %v795 = vpack.c.b16 %v642, %v639
    %v796 = vpack.c.b16 %v643, %v640
    %v797 = vpack.c.b16 %v644, %v641
    %v798 = vpack.c.b16 %v648, %v645
    %v799 = vpack.c.b16 %v649, %v646
    %v800 = vpack.c.b16 %v650, %v647
    %v801 = vpack.c.b16 %v654, %v651
    %v802 = vpack.c.b16 %v655, %v652
    %v803 = vpack.c.b16 %v656, %v653
    %v804 = vpack.c.b16 %v660, %v657
    %v805 = vpack.c.b16 %v661, %v658
    %v806 = vpack.c.b16 %v662, %v659
    %v807 = vpack.c.b16 %v666, %v663
    %v808 = vpack.c.b16 %v667, %v664
    %v809 = vpack.c.b16 %v668, %v665
    %v810 = vpack.c.b16 %v672, %v669
    %v811 = vpack.c.b16 %v673, %v670
    %v812 = vpack.c.b16 %v674, %v671
    %v813 = vpack.c.b16 %v678, %v675
    %v814 = vpack.c.b16 %v679, %v676
    %v815 = vpack.c.b16 %v680, %v677
    %v816 = vpack.c.b16 %v684, %v681
    %v817 = vpack.c.b16 %v685, %v682
    %v818 = vpack.c.b16 %v686, %v683
    %v819 = vpack.c.b16 %v690, %v687
    %v820 = vpack.c.b16 %v691, %v688
    %v821 = vpack.c.b16 %v692, %v689
    %v822 = vpack.c.b16 %v696, %v693
    %v823 = vpack.c.b16 %v697, %v694
    %v824 = vpack.c.b16 %v698, %v695
    %v825 = vpack.c.b16 %v702, %v699
    %v826 = vpack.c.b16 %v703, %v700
    %v827 = vpack.c.b16 %v704, %v701
    %v828 = vpack.c.b16 %v708, %v705
    %v829 = vpack.c.b16 %v709, %v706
    %v830 = vpack.c.b16 %v710, %v707
    %v831 = vpack.c.b16 %v714, %v711
    %v832 = vpack.c.b16 %v715, %v712
    %v833 = vpack.c.b16 %v716, %v713
    %v834 = vpack.c.b16 %v720, %v717
    %v835 = vpack.c.b16 %v721, %v718
    %v836 = vpack.c.b16 %v722, %v719
    %v837 = vpack.c.b16 %v726, %v723
    %v838 = vpack.c.b16 %v727, %v724
    %v839 = vpack.c.b16 %v728, %v725
    %v840 = vpack.c.b16 %v732, %v729
    %v841 = vpack.c.b16 %v733, %v730
    %v842 = vpack.c.b16 %v734, %v731
    %v843 = vpack.c.b16 %v738, %v735
    %v844 = vpack.c.b16 %v739, %v736
    %v845 = vpack.c.b16 %v740, %v737
    %v846 = vpack.c.b16 %v744, %v741
    %v847 = vpack.c.b16 %v745, %v742
    %v848 = vpack.c.b16 %v746, %v743
    %v849 = vpack.c.b16 %v750, %v747
    %v850 = vpack.c.b16 %v751, %v748
    %v851 = vpack.c.b16 %v752, %v749
    %v852 = vpack.c.b16 %v756, %v753
    %v853 = vpack.c.b16 %v757, %v754
    %v854 = vpack.c.b16 %v758, %v755
    %951 = vmatprep.subr.bf16.mxu0 %v760
    %952 = vmatpush1.bf16.msra.mxu0 %v759
    %953 = vmatprep.subr.bf16.mxu0 %v763
    %954 = vmatpush1.bf16.msra.mxu0 %v762
    %955 = vmatprep.subr.bf16.mxu0 %v766
    %956 = vmatpush1.bf16.msra.mxu0 %v765
    %957 = vmatprep.subr.bf16.mxu0 %v769
    %958 = vmatpush1.bf16.msra.mxu0 %v768
    %959 = vmatprep.subr.bf16.mxu0 %v772
    %960 = vmatpush1.bf16.msra.mxu0 %v771
    %961 = vmatprep.subr.bf16.mxu0 %v775
    %962 = vmatpush1.bf16.msra.mxu0 %v774
    %963 = vmatprep.subr.bf16.mxu0 %v778
    %964 = vmatpush1.bf16.msra.mxu0 %v777
    %965 = vmatprep.subr.bf16.mxu0 %v781
    %966 = vmatpush1.bf16.msra.mxu0 %v780
    %967 = vmatprep.subr.bf16.mxu0 %v784
    %968 = vmatpush1.bf16.msra.mxu0 %v783
    %969 = vmatprep.subr.bf16.mxu0 %v787
    %970 = vmatpush1.bf16.msra.mxu0 %v786
    %971 = vmatprep.subr.bf16.mxu0 %v790
    %972 = vmatpush1.bf16.msra.mxu0 %v789
    %973 = vmatprep.subr.bf16.mxu0 %v793
    %974 = vmatpush1.bf16.msra.mxu0 %v792
    %975 = vmatprep.subr.bf16.mxu0 %v796
    %976 = vmatpush1.bf16.msra.mxu0 %v795
    %977 = vmatprep.subr.bf16.mxu0 %v799
    %978 = vmatpush1.bf16.msra.mxu0 %v798
    %979 = vmatprep.subr.bf16.mxu0 %v802
    %980 = vmatpush1.bf16.msra.mxu0 %v801
    %981 = vmatprep.subr.bf16.mxu0 %v805
    %982 = vmatpush1.bf16.msra.mxu0 %v804
    %983 = vmatprep.mubr.bf16.mxu0 %v291
    %984 = vmatmul.mubr.bf16.gmra.mrb[0].mxu0 %v290
    %v985 = vpop.f32.mrb[0].mxu0
    %v986 = vadd.f32 %v427, %v985
    %v987 = vpop.f32.mrb[0].mxu0
    %v988 = vadd.f32 %v431, %v987
    %v989 = vpop.f32.mrb[0].mxu0
    %v990 = vpop.f32.mrb[0].mxu0
    %991 = vdwg.mxu0
    %992 = vmatprep.subr.bf16.mxu0 %v808
    %993 = vmatpush1.bf16.msra.mxu0 %v807
    %994 = vmatprep.subr.bf16.mxu0 %v811
    %995 = vmatpush1.bf16.msra.mxu0 %v810
    %996 = vmatprep.subr.bf16.mxu0 %v814
    %997 = vmatpush1.bf16.msra.mxu0 %v813
    %998 = vmatprep.subr.bf16.mxu0 %v817
    %999 = vmatpush1.bf16.msra.mxu0 %v816
    %1000 = vmatprep.subr.bf16.mxu0 %v820
    %1001 = vmatpush1.bf16.msra.mxu0 %v819
    %1002 = vmatprep.subr.bf16.mxu0 %v823
    %1003 = vmatpush1.bf16.msra.mxu0 %v822
    %1004 = vmatprep.subr.bf16.mxu0 %v826
    %1005 = vmatpush1.bf16.msra.mxu0 %v825
    %1006 = vmatprep.subr.bf16.mxu0 %v829
    %1007 = vmatpush1.bf16.msra.mxu0 %v828
    %1008 = vmatprep.subr.bf16.mxu0 %v832
    %1009 = vmatpush1.bf16.msra.mxu0 %v831
    %1010 = vmatprep.subr.bf16.mxu0 %v835
    %1011 = vmatpush1.bf16.msra.mxu0 %v834
    %1012 = vmatprep.subr.bf16.mxu0 %v838
    %1013 = vmatpush1.bf16.msra.mxu0 %v837
    %1014 = vmatprep.subr.bf16.mxu0 %v841
    %1015 = vmatpush1.bf16.msra.mxu0 %v840
    %1016 = vmatprep.subr.bf16.mxu0 %v844
    %1017 = vmatpush1.bf16.msra.mxu0 %v843
    %1018 = vmatprep.subr.bf16.mxu0 %v847
    %1019 = vmatpush1.bf16.msra.mxu0 %v846
    %1020 = vmatprep.subr.bf16.mxu0 %v850
    %1021 = vmatpush1.bf16.msra.mxu0 %v849
    %1022 = vmatprep.subr.bf16.mxu0 %v853
    %1023 = vmatpush1.bf16.msra.mxu0 %v852
    %1024 = vmatprep.mubr.bf16.mxu0 %v293
    %1025 = vmatmul.mubr.bf16.gmra.mrb[0].mxu0 %v292
    %v1026 = vpop.f32.mrb[0].mxu0
    %v1027 = vadd.f32 %v986, %v1026
    %v1028 = vpop.f32.mrb[0].mxu0
    %v1029 = vadd.f32 %v988, %v1028
    %v1030 = vpop.f32.mrb[0].mxu0
    %v1031 = vpop.f32.mrb[0].mxu0
    %1032 = vdwg.mxu0
    %1033 = vmatprep.subr.bf16.mxu0 0
    %1034 = vmatpush1.bf16.msra.mxu0 %v761
    %1035 = vmatprep.subr.bf16.mxu0 0
    %1036 = vmatpush1.bf16.msra.mxu0 %v764
    %1037 = vmatprep.subr.bf16.mxu0 0
    %1038 = vmatpush1.bf16.msra.mxu0 %v767
    %1039 = vmatprep.subr.bf16.mxu0 0
    %1040 = vmatpush1.bf16.msra.mxu0 %v770
    %1041 = vmatprep.subr.bf16.mxu0 0
    %1042 = vmatpush1.bf16.msra.mxu0 %v773
    %1043 = vmatprep.subr.bf16.mxu0 0
    %1044 = vmatpush1.bf16.msra.mxu0 %v776
    %1045 = vmatprep.subr.bf16.mxu0 0
    %1046 = vmatpush1.bf16.msra.mxu0 %v779
    %1047 = vmatprep.subr.bf16.mxu0 0
    %1048 = vmatpush1.bf16.msra.mxu0 %v782
    %1049 = vmatprep.subr.bf16.mxu0 0
    %1050 = vmatpush1.bf16.msra.mxu0 %v785
    %1051 = vmatprep.subr.bf16.mxu0 0
    %1052 = vmatpush1.bf16.msra.mxu0 %v788
    %1053 = vmatprep.subr.bf16.mxu0 0
    %1054 = vmatpush1.bf16.msra.mxu0 %v791
    %1055 = vmatprep.subr.bf16.mxu0 0
    %1056 = vmatpush1.bf16.msra.mxu0 %v794
    %1057 = vmatprep.subr.bf16.mxu0 0
    %1058 = vmatpush1.bf16.msra.mxu0 %v797
    %1059 = vmatprep.subr.bf16.mxu0 0
    %1060 = vmatpush1.bf16.msra.mxu0 %v800
    %1061 = vmatprep.subr.bf16.mxu0 0
    %1062 = vmatpush1.bf16.msra.mxu0 %v803
    %1063 = vmatprep.subr.bf16.mxu0 0
    %1064 = vmatpush1.bf16.msra.mxu0 %v806
    %1065 = vmatprep.mubr.bf16.mxu0 %v291
    %1066 = vmatmul.mubr.bf16.gmra.mrb[0].mxu0 %v290
    %v1067 = vpop.f32.mrb[0].mxu0
    %v1068 = vadd.f32 %v435, %v1067
    %v1069 = vpop.f32.mrb[0].mxu0
    %v1070 = vpop.f32.mrb[0].mxu0
    %v1071 = vpop.f32.mrb[0].mxu0
    %1072 = vdwg.mxu0
    %1073 = vmatprep.subr.bf16.mxu0 0
    %1074 = vmatpush1.bf16.msra.mxu0 %v809
    %1075 = vmatprep.subr.bf16.mxu0 0
    %1076 = vmatpush1.bf16.msra.mxu0 %v812
    %1077 = vmatprep.subr.bf16.mxu0 0
    %1078 = vmatpush1.bf16.msra.mxu0 %v815
    %1079 = vmatprep.subr.bf16.mxu0 0
    %1080 = vmatpush1.bf16.msra.mxu0 %v818
    %1081 = vmatprep.subr.bf16.mxu0 0
    %1082 = vmatpush1.bf16.msra.mxu0 %v821
    %1083 = vmatprep.subr.bf16.mxu0 0
    %1084 = vmatpush1.bf16.msra.mxu0 %v824
    %1085 = vmatprep.subr.bf16.mxu0 0
    %1086 = vmatpush1.bf16.msra.mxu0 %v827
    %1087 = vmatprep.subr.bf16.mxu0 0
    %1088 = vmatpush1.bf16.msra.mxu0 %v830
    %1089 = vmatprep.subr.bf16.mxu0 0
    %1090 = vmatpush1.bf16.msra.mxu0 %v833
    %1091 = vmatprep.subr.bf16.mxu0 0
    %1092 = vmatpush1.bf16.msra.mxu0 %v836
    %1093 = vmatprep.subr.bf16.mxu0 0
    %1094 = vmatpush1.bf16.msra.mxu0 %v839
    %1095 = vmatprep.subr.bf16.mxu0 0
    %1096 = vmatpush1.bf16.msra.mxu0 %v842
    %1097 = vmatprep.subr.bf16.mxu0 0
    %1098 = vmatpush1.bf16.msra.mxu0 %v845
    %1099 = vmatprep.subr.bf16.mxu0 0
    %1100 = vmatpush1.bf16.msra.mxu0 %v848
    %1101 = vmatprep.subr.bf16.mxu0 0
    %1102 = vmatpush1.bf16.msra.mxu0 %v851
    %1103 = vmatprep.subr.bf16.mxu0 0
    %1104 = vmatpush1.bf16.msra.mxu0 %v854
    %1105 = vmatprep.mubr.bf16.mxu0 %v293
    %1106 = vmatmul.mubr.bf16.gmra.mrb[0].mxu0 %v292
    %v1107 = vpop.f32.mrb[0].mxu0
    %v1108 = vadd.f32 %v1068, %v1107
    %v1109 = vpop.f32.mrb[0].mxu0
    %v1110 = vpop.f32.mrb[0].mxu0
    %v1111 = vpop.f32.mrb[0].mxu0
    %1112 = vdwg.mxu0
    %v1113 = vmax.f32 %v1027, 0.0
    %v1114 = vmax.f32 %v1029, 0.0
    %v1115 = vmax.f32 %v1108, 0.0
    %v1116 = vpack.c.bf16 %v1113, %v1113
    %v1117 = vpack.c.bf16 %v1114, %v1114
    %v1118 = vpack.c.bf16 %v1115, %v1115
    %v1119 = vld [vmem:[#allocation6] sm:$0xf]
    %v1120 = vld [vmem:[#allocation6 + $0x4] sm:$0xf]
    %v1121 = vld [vmem:[#allocation6 + $0x8] sm:$0xf]
    %v1122 = vld [vmem:[#allocation6 + $0xc] sm:$0xf]
    %v1123 = vld [vmem:[#allocation6 + $0x10] sm:$0xf]
    %v1124 = vld [vmem:[#allocation6 + $0x14] sm:$0xf]
    %v1125 = vld [vmem:[#allocation6 + $0x18] sm:$0xf]
    %v1126 = vld [vmem:[#allocation6 + $0x1c] sm:$0xf]
    %v1127 = vld [vmem:[#allocation6 + $0x20] sm:$0xf]
    %v1128 = vld [vmem:[#allocation6 + $0x24] sm:$0xf]
    %v1129 = vld [vmem:[#allocation6 + $0x28] sm:$0xf]
    %v1130 = vld [vmem:[#allocation6 + $0x2c] sm:$0xf]
    %v1131 = vld [vmem:[#allocation6 + $0x30] sm:$0xf]
    %v1132 = vld [vmem:[#allocation6 + $0x34] sm:$0xf]
    %v1133 = vld [vmem:[#allocation6 + $0x38] sm:$0xf]
    %v1134 = vld [vmem:[#allocation6 + $0x3c] sm:$0xf]
    %v1135 = vld [vmem:[#allocation6 + $0x40] sm:$0xf]
    %v1136 = vld [vmem:[#allocation6 + $0x44] sm:$0xf]
    %v1137 = vld [vmem:[#allocation6 + $0x48] sm:$0xf]
    %v1138 = vld [vmem:[#allocation6 + $0x4c] sm:$0xf]
    %v1139 = vld [vmem:[#allocation6 + $0x50] sm:$0xf]
    %v1140 = vld [vmem:[#allocation6 + $0x54] sm:$0xf]
    %v1141 = vld [vmem:[#allocation6 + $0x58] sm:$0xf]
    %v1142 = vld [vmem:[#allocation6 + $0x5c] sm:$0xf]
    %v1143 = vld [vmem:[#allocation6 + $0x60] sm:$0xf]
    %v1144 = vld [vmem:[#allocation6 + $0x64] sm:$0xf]
    %v1145 = vld [vmem:[#allocation6 + $0x68] sm:$0xf]
    %v1146 = vld [vmem:[#allocation6 + $0x6c] sm:$0xf]
    %v1147 = vld [vmem:[#allocation6 + $0x70] sm:$0xf]
    %v1148 = vld [vmem:[#allocation6 + $0x74] sm:$0xf]
    %v1149 = vld [vmem:[#allocation6 + $0x78] sm:$0xf]
    %v1150 = vld [vmem:[#allocation6 + $0x7c] sm:$0xf]
    %v1151 = vld [vmem:[#allocation6 + $0x80] sm:$0xf]
    %v1152 = vld [vmem:[#allocation6 + $0x84] sm:$0xf]
    %v1153 = vld [vmem:[#allocation6 + $0x88] sm:$0xf]
    %v1154 = vld [vmem:[#allocation6 + $0x8c] sm:$0xf]
    %v1155 = vld [vmem:[#allocation6 + $0x90] sm:$0xf]
    %v1156 = vld [vmem:[#allocation6 + $0x94] sm:$0xf]
    %v1157 = vld [vmem:[#allocation6 + $0x98] sm:$0xf]
    %v1158 = vld [vmem:[#allocation6 + $0x9c] sm:$0xf]
    %v1159 = vld [vmem:[#allocation6 + $0xa0] sm:$0xf]
    %v1160 = vld [vmem:[#allocation6 + $0xa4] sm:$0xf]
    %v1161 = vld [vmem:[#allocation6 + $0xa8] sm:$0xf]
    %v1162 = vld [vmem:[#allocation6 + $0xac] sm:$0xf]
    %v1163 = vld [vmem:[#allocation6 + $0xb0] sm:$0xf]
    %v1164 = vld [vmem:[#allocation6 + $0xb4] sm:$0xf]
    %v1165 = vld [vmem:[#allocation6 + $0xb8] sm:$0xf]
    %v1166 = vld [vmem:[#allocation6 + $0xbc] sm:$0xf]
    %v1167 = vld [vmem:[%s6] sm:$0x1]
    %v1169 = vlaneseq
    %v1170 = vshrl.u32 %v1169, 7
    %v1171 = vsub.s32 0, %v1170
    %v1172 = vrot.slane %v1167, %v1171
    %v1222 = vunpack.c.l.b16 %v1119
    %v1223 = vunpack.c.l.b16 %v1120
    %v1224 = vunpack.c.l.b16 %v1121
    %v1225 = vunpack.c.l.b16 %v1122
    %v1226 = vunpack.c.l.b16 %v1123
    %v1227 = vunpack.c.l.b16 %v1124
    %v1228 = vunpack.c.l.b16 %v1125
    %v1229 = vunpack.c.l.b16 %v1126
    %v1230 = vunpack.c.l.b16 %v1127
    %v1231 = vunpack.c.l.b16 %v1128
    %v1232 = vunpack.c.l.b16 %v1129
    %v1233 = vunpack.c.l.b16 %v1130
    %v1234 = vunpack.c.l.b16 %v1131
    %v1235 = vunpack.c.l.b16 %v1132
    %v1236 = vunpack.c.l.b16 %v1133
    %v1237 = vunpack.c.l.b16 %v1134
    %v1238 = vunpack.c.l.b16 %v1135
    %v1239 = vunpack.c.l.b16 %v1136
    %v1240 = vunpack.c.l.b16 %v1137
    %v1241 = vunpack.c.l.b16 %v1138
    %v1242 = vunpack.c.l.b16 %v1139
    %v1243 = vunpack.c.l.b16 %v1140
    %v1244 = vunpack.c.l.b16 %v1141
    %v1245 = vunpack.c.l.b16 %v1142
    %v1246 = vunpack.c.l.b16 %v1143
    %v1247 = vunpack.c.l.b16 %v1144
    %v1248 = vunpack.c.l.b16 %v1145
    %v1249 = vunpack.c.l.b16 %v1146
    %v1250 = vunpack.c.l.b16 %v1147
    %v1251 = vunpack.c.l.b16 %v1148
    %v1252 = vunpack.c.l.b16 %v1149
    %v1253 = vunpack.c.l.b16 %v1150
    %v1254 = vunpack.c.l.b16 %v1151
    %v1255 = vunpack.c.l.b16 %v1152
    %v1256 = vunpack.c.l.b16 %v1153
    %v1257 = vunpack.c.l.b16 %v1154
    %v1258 = vunpack.c.l.b16 %v1155
    %v1259 = vunpack.c.l.b16 %v1156
    %v1260 = vunpack.c.l.b16 %v1157
    %v1261 = vunpack.c.l.b16 %v1158
    %v1262 = vunpack.c.l.b16 %v1159
    %v1263 = vunpack.c.l.b16 %v1160
    %v1264 = vunpack.c.l.b16 %v1161
    %v1265 = vunpack.c.l.b16 %v1162
    %v1266 = vunpack.c.l.b16 %v1163
    %v1267 = vunpack.c.l.b16 %v1164
    %v1268 = vunpack.c.l.b16 %v1165
    %v1269 = vunpack.c.l.b16 %v1166
    %v1270 = vpack.c.b16 %v1223, %v1222
    %v1271 = vpack.c.b16 %v1225, %v1224
    %v1272 = vpack.c.b16 %v1227, %v1226
    %v1273 = vpack.c.b16 %v1229, %v1228
    %v1274 = vpack.c.b16 %v1231, %v1230
    %v1275 = vpack.c.b16 %v1233, %v1232
    %v1276 = vpack.c.b16 %v1235, %v1234
    %v1277 = vpack.c.b16 %v1237, %v1236
    %v1278 = vpack.c.b16 %v1239, %v1238
    %v1279 = vpack.c.b16 %v1241, %v1240
    %v1280 = vpack.c.b16 %v1243, %v1242
    %v1281 = vpack.c.b16 %v1245, %v1244
    %v1282 = vpack.c.b16 %v1247, %v1246
    %v1283 = vpack.c.b16 %v1249, %v1248
    %v1284 = vpack.c.b16 %v1251, %v1250
    %v1285 = vpack.c.b16 %v1253, %v1252
    %v1286 = vpack.c.b16 %v1255, %v1254
    %v1287 = vpack.c.b16 %v1257, %v1256
    %v1288 = vpack.c.b16 %v1259, %v1258
    %v1289 = vpack.c.b16 %v1261, %v1260
    %v1290 = vpack.c.b16 %v1263, %v1262
    %v1291 = vpack.c.b16 %v1265, %v1264
    %v1292 = vpack.c.b16 %v1267, %v1266
    %v1293 = vpack.c.b16 %v1269, %v1268
    %1318 = vmatprep.subr.bf16.mxu0 0
    %1319 = vmatpush1.bf16.msra.mxu0 %v1270
    %1320 = vmatprep.subr.bf16.mxu0 0
    %1321 = vmatpush1.bf16.msra.mxu0 %v1271
    %1322 = vmatprep.subr.bf16.mxu0 0
    %1323 = vmatpush1.bf16.msra.mxu0 %v1272
    %1324 = vmatprep.subr.bf16.mxu0 0
    %1325 = vmatpush1.bf16.msra.mxu0 %v1273
    %1326 = vmatprep.subr.bf16.mxu0 0
    %1327 = vmatpush1.bf16.msra.mxu0 %v1274
    %1328 = vmatprep.subr.bf16.mxu0 0
    %1329 = vmatpush1.bf16.msra.mxu0 %v1275
    %1330 = vmatprep.subr.bf16.mxu0 0
    %1331 = vmatpush1.bf16.msra.mxu0 %v1276
    %1332 = vmatprep.subr.bf16.mxu0 0
    %1333 = vmatpush1.bf16.msra.mxu0 %v1277
    %1334 = vmatprep.subr.bf16.mxu0 0
    %1335 = vmatpush1.bf16.msra.mxu0 %v1278
    %1336 = vmatprep.subr.bf16.mxu0 0
    %1337 = vmatpush1.bf16.msra.mxu0 %v1279
    %1338 = vmatprep.subr.bf16.mxu0 0
    %1339 = vmatpush1.bf16.msra.mxu0 %v1280
    %1340 = vmatprep.subr.bf16.mxu0 0
    %1341 = vmatpush1.bf16.msra.mxu0 %v1281
    %1342 = vmatprep.subr.bf16.mxu0 0
    %1343 = vmatpush1.bf16.msra.mxu0 %v1282
    %1344 = vmatprep.subr.bf16.mxu0 0
    %1345 = vmatpush1.bf16.msra.mxu0 %v1283
    %1346 = vmatprep.subr.bf16.mxu0 0
    %1347 = vmatpush1.bf16.msra.mxu0 %v1284
    %1348 = vmatprep.subr.bf16.mxu0 0
    %1349 = vmatpush1.bf16.msra.mxu0 %v1285
    %1350 = vmatprep.mubr.bf16.mxu0 %v1117
    %1351 = vmatmul.mubr.bf16.gmra.mrb[0].mxu0 %v1116
    %v1352 = vpop.f32.mrb[0].mxu0
    %v1353 = vadd.f32 %v1172, %v1352
    %v1354 = vpop.f32.mrb[0].mxu0
    %v1355 = vpop.f32.mrb[0].mxu0
    %v1356 = vpop.f32.mrb[0].mxu0
    %1357 = vdwg.mxu0
    %1358 = vmatprep.subr.bf16.mxu0 0
    %1359 = vmatpush1.bf16.msra.mxu0 %v1286
    %1360 = vmatprep.subr.bf16.mxu0 0
    %1361 = vmatpush1.bf16.msra.mxu0 %v1287
    %1362 = vmatprep.subr.bf16.mxu0 0
    %1363 = vmatpush1.bf16.msra.mxu0 %v1288
    %1364 = vmatprep.subr.bf16.mxu0 0
    %1365 = vmatpush1.bf16.msra.mxu0 %v1289
    %1366 = vmatprep.subr.bf16.mxu0 0
    %1367 = vmatpush1.bf16.msra.mxu0 %v1290
    %1368 = vmatprep.subr.bf16.mxu0 0
    %1369 = vmatpush1.bf16.msra.mxu0 %v1291
    %1370 = vmatprep.subr.bf16.mxu0 0
    %1371 = vmatpush1.bf16.msra.mxu0 %v1292
    %1372 = vmatprep.subr.bf16.mxu0 0
    %1373 = vmatpush1.bf16.msra.mxu0 %v1293
    %1374 = vmatprep.subr.bf16.mxu0 0
    %1375 = vmatpush1.bf16.msra.mxu0 0
    %1376 = vmatprep.subr.bf16.mxu0 0
    %1377 = vmatpush1.bf16.msra.mxu0 0
    %1378 = vmatprep.subr.bf16.mxu0 0
    %1379 = vmatpush1.bf16.msra.mxu0 0
    %1380 = vmatprep.subr.bf16.mxu0 0
    %1381 = vmatpush1.bf16.msra.mxu0 0
    %1382 = vmatprep.subr.bf16.mxu0 0
    %1383 = vmatpush1.bf16.msra.mxu0 0
    %1384 = vmatprep.subr.bf16.mxu0 0
    %1385 = vmatpush1.bf16.msra.mxu0 0
    %1386 = vmatprep.subr.bf16.mxu0 0
    %1387 = vmatpush1.bf16.msra.mxu0 0
    %1388 = vmatprep.subr.bf16.mxu0 0
    %1389 = vmatpush1.bf16.msra.mxu0 0
    %1390 = vmatprep.mubr.bf16.mxu0 0
    %1391 = vmatmul.mubr.bf16.gmra.mrb[0].mxu0 %v1118
    %v1392 = vpop.f32.mrb[0].mxu0
    %v1393 = vadd.f32 %v1353, %v1392
    %v1394 = vpop.f32.mrb[0].mxu0
    %v1395 = vpop.f32.mrb[0].mxu0
    %v1396 = vpop.f32.mrb[0].mxu0
    %1397 = vdwg.mxu0
    %1398 = vst [vmem:[%s7] sm:$0xff] %v1393
    // Predicated region
    $region42: #{net_forward.1} parent=1 // pred_check
      _
    $region43: #{net_forward.1} parent=1 // pred_check_branch
      %1400 = sbr.rel (0) target = $region45
    $region44: #{net_forward.1} parent=1 // pred_region
      _
    $region45: #{net_forward.1} parent=1 // pred_fallthru
      _
    // Predicated region
    $region46: #{net_forward.1} parent=1 // pred_check
      _
    $region47: #{net_forward.1} parent=1 // pred_check_branch
      %1402 = sbr.rel (0) target = $region49
    $region48: #{net_forward.1} parent=1 // pred_region
      _
    $region49: #{net_forward.1} parent=1 // pred_fallthru
      _
    %1403 = vsyncpa [#allocation3], 1
    %1404 = vsyncpa [#allocation5], 1

</llo_original>
